<compile_context>
chip_gen: v5e
topology: v5e:2x2
jax: 0.10.0
libtpu: 0.0.40
codegen_flags: <defaults>
</compile_context>

<pallas_src>
import jax
import jax.numpy as jnp
from jax import lax
from jax.experimental import pallas as pl
from jax.experimental.pallas import tpu as pltpu

LN_EPS = 1e-5      # nn.LayerNorm default
L2_EPS = 1e-12     # F.normalize default


def _projection_kernel(x_ref, w_ref, p_ref, o_ref):
    # x_ref: (TB, H) bf16 — CLS rows for this batch tile.
    # w_ref: (H, P)  bf16 — projection weight, pre-transposed (single-buffered).
    # p_ref: (3, P)  f32  — rows: [bias, ln_gamma, ln_beta] (single-buffered).
    x = x_ref[...]
    w = w_ref[...]

    # Linear: bf16 operands on the MXU, f32 accumulate.
    y = jnp.dot(x, w, preferred_element_type=jnp.float32)       # (TB, P) f32
    y = y + p_ref[0:1, :]                                        # + bias

    # LayerNorm over last dim (f32 epilogue; biased variance like nn.LayerNorm).
    mean = jnp.mean(y, axis=-1, keepdims=True)
    centered = y - mean
    var = jnp.mean(centered * centered, axis=-1, keepdims=True)
    feat = centered * lax.rsqrt(var + LN_EPS) * p_ref[1:2, :] + p_ref[2:3, :]

    # Dropout is identity at inference time.

    # F.normalize(dim=-1): x / max(||x||, eps)  ==  x * rsqrt(max(||x||^2, eps^2))
    sq = jnp.sum(feat * feat, axis=-1, keepdims=True)
    feat = feat * lax.rsqrt(jnp.maximum(sq, L2_EPS * L2_EPS))

    o_ref[...] = feat.astype(o_ref.dtype)


def _round_up(n, m):
    return ((n + m - 1) // m) * m


def _vmem_bytes(tb, H, P):
    # Per-kernel VMEM footprint estimate:
    #   x (bf16, double-buffered) + weight (bf16, single) + params (f32, single)
    #   + out (f32, double-buffered).
    return (2 * tb * H * 2
            + H * P * 2
            + 3 * P * 4
            + 2 * tb * P * 4)


def _choose_tb(B, H, P, tb_max, vmem_budget):
    """Pick the batch tile: multiple of 16 (bf16 rows), >=2 grid steps when the
    batch allows it (v7x megacore), capped by the VMEM budget."""
    tb = tb_max
    if B > 16:
        # Ensure at least 2 parallel grid steps so v7x's 2 TensorCores both work.
        tb = min(tb, _round_up(pl.cdiv(B, 2), 16))
    tb = min(tb, _round_up(B, 16))
    tb = max(16, _round_up(tb, 16))
    while tb > 16 and _vmem_bytes(tb, H, P) > vmem_budget:
        tb = max(16, _round_up(tb // 2, 16))
    return tb


def projection_encoder_head(last_hidden_state, w_t, b, gamma, beta, *,
                            tb_max=1024, vmem_budget=40 * 1024 * 1024):
    """last_hidden_state: (B, S, H); w_t: (H, P); b/gamma/beta: (P,) -> (B, P).

    For best MXU cadence keep H a multiple of 256 (128 on v5e) and P a multiple
    of 128; any H/P still compiles since the blocks span the full H / P dims.
    """
    B, S, H = last_hidden_state.shape
    P = w_t.shape[1]

    # Slice the CLS row FIRST: only B*H elements ever touch HBM after this,
    # never the full (B, S, H) activation.
    cls = last_hidden_state[:, 0, :]                       # (B, H)

    TB = _choose_tb(B, H, P, tb_max, vmem_budget)
    B_pad = _round_up(B, TB)

    # bf16 MXU operands; the LN / L2 epilogue stays f32 inside the kernel.
    x = cls.astype(jnp.bfloat16)
    if B_pad != B:
        # Zero padding -> padded rows are finite and simply dropped by out[:B].
        x = jnp.pad(x, ((0, B_pad - B), (0, 0)))
    w = w_t.astype(jnp.bfloat16)
    # Pack bias / gamma / beta into one operand: one DMA, one VMEM block.
    params = jnp.stack([b, gamma, beta]).astype(jnp.float32)   # (3, P)

    est = _vmem_bytes(TB, H, P)
    # Explicit scoped-VMEM limit (v5e default is only 16 MiB); capped at v7x's
    # 64 MiB physical so the same setting is safe on every generation.
    vmem_limit = int(min(max(2 * est, 32 * 1024 * 1024), 64 * 1024 * 1024))

    cost = pl.CostEstimate(
        flops=2 * B_pad * H * P,
        transcendentals=2 * B_pad,                          # LN rsqrt + L2 rsqrt
        bytes_accessed=B_pad * H * 2 + H * P * 2 + 3 * P * 4 + B_pad * P * 4,
    )

    out = pl.pallas_call(
        _projection_kernel,
        out_shape=jax.ShapeDtypeStruct((B_pad, P), jnp.float32),
        grid_spec=pltpu.PrefetchScalarGridSpec(
            num_scalar_prefetch=0,
            grid=(B_pad // TB,),
            in_specs=[
                # Batch-tiled CLS rows: double-buffered by default.
                pl.BlockSpec((TB, H), lambda i: (i, 0)),
                # Grid-invariant operands: single-buffered (DMA'd once).
                pl.BlockSpec((H, P), lambda i: (0, 0),
                             pipeline_mode=pl.Buffered(1)),
                pl.BlockSpec((3, P), lambda i: (0, 0),
                             pipeline_mode=pl.Buffered(1)),
            ],
            out_specs=pl.BlockSpec((TB, P), lambda i: (i, 0)),
        ),
        compiler_params=pltpu.CompilerParams(
            dimension_semantics=("parallel",),
            vmem_limit_bytes=vmem_limit),
        cost_estimate=cost,
    )(x, w, params)
    return out[:B]


def reference(last_hidden_state, w_t, b, gamma, beta):
    x = last_hidden_state[:, 0, :].astype(jnp.float32)
    y = x @ w_t + b
    mean = jnp.mean(y, axis=-1, keepdims=True)
    var = jnp.mean((y - mean) ** 2, axis=-1, keepdims=True)
    feat = (y - mean) / jnp.sqrt(var + LN_EPS) * gamma + beta
    norm = jnp.linalg.norm(feat, axis=-1, keepdims=True)
    return feat / jnp.maximum(norm, L2_EPS)


if __name__ == "__main__":
    # Small shapes; B not a multiple of the tile to exercise padding + a
    # multi-step parallel grid. H and P lane-dense (multiples of 128).
    B, S, H, P = 20, 8, 128, 128

    key = jax.random.PRNGKey(0)
    k_x, k_w, k_b, k_g, k_beta = jax.random.split(key, 5)

    last_hidden_state = jax.random.normal(k_x, (B, S, H), dtype=jnp.float32)
    # nn.Linear(H, P): weight (P, H) — kept pre-transposed as (H, P) for the MXU.
    w_t = jax.random.normal(k_w, (H, P), dtype=jnp.float32) * (1.0 / jnp.sqrt(H))
    b = 0.01 * jax.random.normal(k_b, (P,), dtype=jnp.float32)
    gamma = jnp.ones((P,), jnp.float32) + 0.01 * jax.random.normal(k_g, (P,))
    beta = 0.01 * jax.random.normal(k_beta, (P,), dtype=jnp.float32)

    # tb_max=16 -> TB=16, B_pad=32, grid=(2,): exercises padding + 2 parallel steps.
    out = projection_encoder_head(last_hidden_state, w_t, b, gamma, beta,
                                  tb_max=16)
    out = jax.block_until_ready(out)

    ref = reference(last_hidden_state, w_t, b, gamma, beta)
    assert out.shape == (B, P)
    # bf16 MXU operands -> loosened tolerance vs the f32 reference.
    max_err = float(jnp.max(jnp.abs(out - ref)))
    assert max_err < 2e-2, f"mismatch vs reference: max abs err {max_err}"
    # Rows must be unit-norm after F.normalize.
    norms = jnp.linalg.norm(out, axis=-1)
    assert jnp.allclose(norms, 1.0, atol=1e-3), "output rows not unit-norm"

    print("KERNEL_OK")
</pallas_src>

<mosaic_0001>
module attributes {stable_mosaic.version = 11 : i64} {
  func.func @_projection_kernel(%arg0: i32, %arg1: memref<16x128xbf16, #tpu.memory_space<vmem>>, %arg2: memref<128x128xbf16, #tpu.memory_space<vmem>>, %arg3: memref<3x128xf32, #tpu.memory_space<vmem>>, %arg4: memref<16x128xf32, #tpu.memory_space<vmem>>) attributes {dimension_semantics = [#tpu.dimension_semantics<parallel>], iteration_bounds = array<i64: 2>, scalar_prefetch = 0 : i64, scratch_operands = 0 : i64, tpu.core_type = #tpu.core_type<tc>, window_params = [{transform_indices = @transform_0, window_bounds = array<i64: 16, 128>}, {pipeline_mode = #tpu.pipeline_mode<synchronous>, transform_indices = @transform_1, window_bounds = array<i64: 128, 128>}, {pipeline_mode = #tpu.pipeline_mode<synchronous>, transform_indices = @transform_2, window_bounds = array<i64: 3, 128>}, {transform_indices = @transform_3, window_bounds = array<i64: 16, 128>}]} {
    %c0 = arith.constant 0 : index
    %c0_0 = arith.constant 0 : index
    %0 = vector.load %arg1[%c0, %c0_0] : memref<16x128xbf16, #tpu.memory_space<vmem>>, vector<16x128xbf16>
    %c0_1 = arith.constant 0 : index
    %c0_2 = arith.constant 0 : index
    %1 = vector.load %arg2[%c0_1, %c0_2] : memref<128x128xbf16, #tpu.memory_space<vmem>>, vector<128x128xbf16>
    %cst = arith.constant dense<0.000000e+00> : vector<16x128xf32>
    %2 = tpu.matmul %0, %1, %cst {dimension_numbers = #tpu.dot_dimension_numbers<[1], [0], [0], [1], [0, 0, 1, 1], [], []>} : vector<16x128xbf16>, vector<128x128xbf16>, vector<16x128xf32> -> vector<16x128xf32>
    %c0_3 = arith.constant 0 : index
    %c0_4 = arith.constant 0 : index
    %3 = vector.load %arg3[%c0_3, %c0_4] : memref<3x128xf32, #tpu.memory_space<vmem>>, vector<1x128xf32>
    %4 = vector.broadcast %3 : vector<1x128xf32> to vector<16x128xf32>
    %5 = arith.addf %2, %4 : vector<16x128xf32>
    %cst_5 = arith.constant dense<0.000000e+00> : vector<16xf32>
    %6 = vector.multi_reduction <add>, %5, %cst_5 [1] : vector<16x128xf32> to vector<16xf32>
    %7 = vector.shape_cast %6 : vector<16xf32> to vector<16x1xf32>
    %cst_6 = arith.constant 1.280000e+02 : f32
    %8 = vector.broadcast %cst_6 : f32 to vector<16x1xf32>
    %9 = arith.divf %7, %8 : vector<16x1xf32>
    %10 = vector.broadcast %9 : vector<16x1xf32> to vector<16x128xf32>
    %11 = arith.subf %5, %10 : vector<16x128xf32>
    %12 = arith.mulf %11, %11 : vector<16x128xf32>
    %cst_7 = arith.constant dense<0.000000e+00> : vector<16xf32>
    %13 = vector.multi_reduction <add>, %12, %cst_7 [1] : vector<16x128xf32> to vector<16xf32>
    %14 = vector.shape_cast %13 : vector<16xf32> to vector<16x1xf32>
    %cst_8 = arith.constant 1.280000e+02 : f32
    %15 = vector.broadcast %cst_8 : f32 to vector<16x1xf32>
    %16 = arith.divf %14, %15 : vector<16x1xf32>
    %cst_9 = arith.constant 9.99999974E-6 : f32
    %17 = vector.broadcast %cst_9 : f32 to vector<16x1xf32>
    %18 = arith.addf %16, %17 : vector<16x1xf32>
    %19 = math.rsqrt %18 : vector<16x1xf32>
    %20 = vector.broadcast %19 : vector<16x1xf32> to vector<16x128xf32>
    %21 = arith.mulf %11, %20 : vector<16x128xf32>
    %c1 = arith.constant 1 : index
    %c0_10 = arith.constant 0 : index
    %22 = vector.load %arg3[%c1, %c0_10] : memref<3x128xf32, #tpu.memory_space<vmem>>, vector<1x128xf32>
    %23 = vector.broadcast %22 : vector<1x128xf32> to vector<16x128xf32>
    %24 = arith.mulf %21, %23 : vector<16x128xf32>
    %c2 = arith.constant 2 : index
    %c0_11 = arith.constant 0 : index
    %25 = vector.load %arg3[%c2, %c0_11] : memref<3x128xf32, #tpu.memory_space<vmem>>, vector<1x128xf32>
    %26 = vector.broadcast %25 : vector<1x128xf32> to vector<16x128xf32>
    %27 = arith.addf %24, %26 : vector<16x128xf32>
    %28 = arith.mulf %27, %27 : vector<16x128xf32>
    %cst_12 = arith.constant dense<0.000000e+00> : vector<16xf32>
    %29 = vector.multi_reduction <add>, %28, %cst_12 [1] : vector<16x128xf32> to vector<16xf32>
    %30 = vector.shape_cast %29 : vector<16xf32> to vector<16x1xf32>
    %cst_13 = arith.constant 1.000000e-24 : f32
    %31 = vector.broadcast %cst_13 : f32 to vector<16x1xf32>
    %32 = arith.maximumf %30, %31 : vector<16x1xf32>
    %33 = math.rsqrt %32 : vector<16x1xf32>
    %34 = vector.broadcast %33 : vector<16x1xf32> to vector<16x128xf32>
    %35 = arith.mulf %27, %34 : vector<16x128xf32>
    %c0_14 = arith.constant 0 : index
    %c0_15 = arith.constant 0 : index
    %36 = vector.load %arg4[%c0_14, %c0_15] : memref<16x128xf32, #tpu.memory_space<vmem>>, vector<16x128xf32>
    tpu.vector_store %arg4[%c0_14, %c0_15], %35 {strides = array<i32>} : memref<16x128xf32, #tpu.memory_space<vmem>>, vector<16x128xf32>,
    return
  }
  func.func @transform_0(%arg0: i32) -> (i32, i32) {
    %c0_i32 = arith.constant 0 : i32
    %c0_i32_0 = arith.constant 0 : i32
    return %arg0, %c0_i32 : i32, i32
  }
  func.func @transform_1(%arg0: i32) -> (i32, i32) {
    %c0_i32 = arith.constant 0 : i32
    %c0_i32_0 = arith.constant 0 : i32
    %c0_i32_1 = arith.constant 0 : i32
    return %c0_i32, %c0_i32_0 : i32, i32
  }
  func.func @transform_2(%arg0: i32) -> (i32, i32) {
    %c0_i32 = arith.constant 0 : i32
    %c0_i32_0 = arith.constant 0 : i32
    %c0_i32_1 = arith.constant 0 : i32
    return %c0_i32, %c0_i32_0 : i32, i32
  }
  func.func @transform_3(%arg0: i32) -> (i32, i32) {
    %c0_i32 = arith.constant 0 : i32
    %c0_i32_0 = arith.constant 0 : i32
    return %arg0, %c0_i32 : i32, i32
  }
}

</mosaic_0001>

<llo_original>
// kernel: tpu_custom_call.1
$region0: #{tpu_custom_call.1}
  #allocation0 [shape = 'u32[]', space=smem, size = 0x4, offset = 0x4, fixed_abs, tag = 'smem constant byte address 0x4 - core index']
  #allocation1 [shape = 'u32[72,128]{1,0:T(1,128)}', space=vmem, size = 0x9000, scoped, tag = 'internal scratch']
  %s0 = inlined_call_operand.hbm [shape: bf16[32,128], index: 0, kind: input, shape index: {}]
  %s1 = inlined_call_operand.hbm [shape: bf16[128,128], index: 1, kind: input, shape index: {}]
  %s2 = inlined_call_operand.hbm [shape: f32[3,128], index: 2, kind: input, shape index: {}]
  %s3 = inlined_call_operand.hbm [shape: f32[32,128], index: 3, kind: output, shape index: {}]
  %s4 = sld [smem:[#allocation0]]
  $region57: #{tpu_custom_call.1} parent=0
    _
  %s6 = ssub.s32 1, %s4
  %s7 = scalar_select 0, %s6, %s4
  $region1: #{tpu_custom_call.1} parent=0
    #allocation2 [shape = 'u8[8192]{0}', space=vmem, size = 0x2000, scoped, tag = 'input window, operand 0']
    #allocation3 [shape = 's32[2]{0}', space=sflag, size = 0x8, scoped, tag = 'scoped memory for tpu_custom_call.1']
    #allocation4 [shape = 's32[2]{0}', space=sflag, size = 0x8, scoped, tag = 'scoped memory for tpu_custom_call.1']
    #allocation5 [shape = 'u8[32768]{0}', space=vmem, size = 0x8000, scoped, tag = 'input window, operand 1, single buffered']
    #allocation6 [shape = 's32[1]{0}', space=sflag, size = 0x4, scoped, tag = 'scoped memory for tpu_custom_call.1']
    #allocation7 [shape = 'u8[2048]{0}', space=vmem, size = 0x800, scoped, tag = 'input window, operand 2, single buffered']
    #allocation8 [shape = 'u8[16384]{0}', space=vmem, size = 0x4000, scoped, tag = 'output window, operand 0']
    %8 = vsyncpa [#allocation3], 0
    %s9 = scalar_lea.sflag [#allocation3], 1
    %10 = vsyncpa %s9, 0
    %11 = vsyncpa [#allocation6], 0
    %12 = vsyncpa [#allocation4], 0
    %s13 = scalar_lea.sflag [#allocation4], 1
    %14 = vsyncpa %s13, 0
    loop: start=0, step=1, limit=4
    $region2: #{tpu_custom_call.1} parent=1 // loop_pre_header
      _
    $region3: #{tpu_custom_call.1} parent=1 // loop_header
      %s16 = sphi 0, %s20
      %p17 = scmp.ge.s32.totalorder %s16, 4
      %s26 = sphi 0, %s28
      %s29 = sphi 0, %s26
      %s30 = sphi 0, %s29
      %s46 = sphi 0, %s30
      %s50 = sphi 0, %s50
      %s52 = sphi 0, %s50
      %s53 = sphi 0, %s52
      %s67 = sphi 0, %s53
      %s71 = sphi 0, %s71
      %s73 = sphi 0, %s71
      %s74 = sphi 0, %s73
      %s88 = sphi 0, %s74
      %s94 = sphi 0, %s96
      %s97 = sphi 0, %s94
      %s98 = sphi 0, %s97
      %s114 = sphi 0, %s98
    $region4: #{tpu_custom_call.1} parent=1 // loop_header_branch
      %19 = sbr.rel (%p17) target = $region8
    $region5: #{tpu_custom_call.1} parent=1 // loop_body
      %s21 = ssub.s32 %s16, 1
      %s22 = ssub.s32 %s16, 2
      %s23 = sadd.s32 %s16, 1
      %s24 = ssub.s32 %s16, %s23
      %p25 = scmp.eq.s32.totalorder %s24, 0
      %s27 = sadd.s32 %s26, 1
      %s28 = scalar_select %p25, %s26, %s27
      %p31 = pneg %p25
      %p32 = scmp.eq.s32.totalorder %s16, 1
      %p33 = por %p31, %p32
      %p34 = scmp.ne.s32.totalorder %s26, %s29
      %p35 = scmp.eq.s32.totalorder %s16, 0
      %p36 = por %p34, %p35
      %p37 = scmp.ne.s32.totalorder %s26, %s29
      %p38 = scmp.eq.s32.totalorder %s21, 1
      %p39 = por %p37, %p38
      %p40 = scmp.ne.s32.totalorder %s29, %s30
      %p41 = scmp.eq.s32.totalorder %s21, 0
      %p42 = por %p40, %p41
      %p43 = scmp.ne.s32.totalorder %s29, %s30
      %p44 = scmp.eq.s32.totalorder %s22, 1
      %p45 = por %p43, %p44
      %p47 = scmp.ne.s32.totalorder %s30, %s46
      %p48 = scmp.eq.s32.totalorder %s22, 0
      %p49 = por %p47, %p48
      %s51 = sadd.s32 %s50, 1
      %p54 = scmp.eq.s32.totalorder %s16, 1
      %p55 = scmp.ne.s32.totalorder %s50, %s52
      %p56 = scmp.eq.s32.totalorder %s16, 0
      %p57 = por %p55, %p56
      %p58 = scmp.ne.s32.totalorder %s50, %s52
      %p59 = scmp.eq.s32.totalorder %s21, 1
      %p60 = por %p58, %p59
      %p61 = scmp.ne.s32.totalorder %s52, %s53
      %p62 = scmp.eq.s32.totalorder %s21, 0
      %p63 = por %p61, %p62
      %p64 = scmp.ne.s32.totalorder %s52, %s53
      %p65 = scmp.eq.s32.totalorder %s22, 1
      %p66 = por %p64, %p65
      %p68 = scmp.ne.s32.totalorder %s53, %s67
      %p69 = scmp.eq.s32.totalorder %s22, 0
      %p70 = por %p68, %p69
      %s72 = sadd.s32 %s71, 1
      %p75 = scmp.eq.s32.totalorder %s16, 1
      %p76 = scmp.ne.s32.totalorder %s71, %s73
      %p77 = scmp.eq.s32.totalorder %s16, 0
      %p78 = por %p76, %p77
      %p79 = scmp.ne.s32.totalorder %s71, %s73
      %p80 = scmp.eq.s32.totalorder %s21, 1
      %p81 = por %p79, %p80
      %p82 = scmp.ne.s32.totalorder %s73, %s74
      %p83 = scmp.eq.s32.totalorder %s21, 0
      %p84 = por %p82, %p83
      %p85 = scmp.ne.s32.totalorder %s73, %s74
      %p86 = scmp.eq.s32.totalorder %s22, 1
      %p87 = por %p85, %p86
      %p89 = scmp.ne.s32.totalorder %s74, %s88
      %p90 = scmp.eq.s32.totalorder %s22, 0
      %p91 = por %p89, %p90
      %s92 = ssub.s32 %s16, %s23
      %p93 = scmp.eq.s32.totalorder %s92, 0
      %s95 = sadd.s32 %s94, 1
      %s96 = scalar_select %p93, %s94, %s95
      %p99 = pneg %p93
      %p100 = scmp.eq.s32.totalorder %s16, 1
      %p101 = por %p99, %p100
      %p102 = scmp.ne.s32.totalorder %s94, %s97
      %p103 = scmp.eq.s32.totalorder %s16, 0
      %p104 = por %p102, %p103
      %p105 = scmp.ne.s32.totalorder %s94, %s97
      %p106 = scmp.eq.s32.totalorder %s21, 1
      %p107 = por %p105, %p106
      %p108 = scmp.ne.s32.totalorder %s97, %s98
      %p109 = scmp.eq.s32.totalorder %s21, 0
      %p110 = por %p108, %p109
      %p111 = scmp.ne.s32.totalorder %s97, %s98
      %p112 = scmp.eq.s32.totalorder %s22, 1
      %p113 = por %p111, %p112
      %p115 = scmp.ne.s32.totalorder %s98, %s114
      %p116 = scmp.eq.s32.totalorder %s22, 0
      %p117 = por %p115, %p116
      %p118 = scmp.le.s32.totalorder 1, %s16
      %p119 = scmp.lt.s32.totalorder %s16, 3
      %p120 = pnand %p118, %p119
      %p121 = pneg %p120
      // Predicated region
      $region9: #{tpu_custom_call.1} parent=5 // pred_check
        _
      $region10: #{tpu_custom_call.1} parent=5 // pred_check_branch
        %123 = sbr.rel (%p120) target = $region12
      $region11: #{tpu_custom_call.1} parent=5 // pred_region
        %s124 = ssub.s32 %s16, 1
        // Predicated region
        $region13: #{tpu_custom_call.1} parent=11 // pred_check
          %p125 = pneg %p63
        $region14: #{tpu_custom_call.1} parent=11 // pred_check_branch
          %127 = sbr.rel (%p125) target = $region16
        $region15: #{tpu_custom_call.1} parent=11 // pred_region
          %129 = vsyncadd [#allocation6], 0
          %s130 = sshll.u32 %s1, 4
          %s131 = int_to_ptr.hbm [resolvable:$true] %s130
          %s132 = sshll.u32 [#allocation5], 4
          %s133 = int_to_ptr.vmem [resolvable:$true] %s132
          %138 = dma.hbm_to_vmem [thread:$0]  %s131, 1024, %s133, [#allocation6], 64, 64, 4
        $region16: #{tpu_custom_call.1} parent=11 // pred_fallthru
          _
        // Predicated region
        $region17: #{tpu_custom_call.1} parent=11 // pred_check
          %p139 = pneg %p84
        $region18: #{tpu_custom_call.1} parent=11 // pred_check_branch
          %141 = sbr.rel (%p139) target = $region20
        $region19: #{tpu_custom_call.1} parent=11 // pred_region
          %143 = vsyncadd [#allocation6], 0
          %s145 = sshll.u32 %s2, 4
          %s146 = int_to_ptr.hbm [resolvable:$true] %s145
          %s147 = sshll.u32 [#allocation7], 4
          %s148 = int_to_ptr.vmem [resolvable:$true] %s147
          %150 = dma.hbm_to_vmem [thread:$0]  %s146, 64, %s148, [#allocation6]
        $region20: #{tpu_custom_call.1} parent=11 // pred_fallthru
          _
      $region12: #{tpu_custom_call.1} parent=5 // pred_fallthru
        _
      %p151 = scmp.lt.s32.totalorder %s16, 2
      // Predicated region
      $region21: #{tpu_custom_call.1} parent=5 // pred_check
        %p152 = pneg %p151
      $region22: #{tpu_custom_call.1} parent=5 // pred_check_branch
        %154 = sbr.rel (%p152) target = $region24
      $region23: #{tpu_custom_call.1} parent=5 // pred_region
        // Predicated region
        $region25: #{tpu_custom_call.1} parent=23 // pred_check
          %p155 = pneg %p36
        $region26: #{tpu_custom_call.1} parent=23 // pred_check_branch
          %157 = sbr.rel (%p155) target = $region28
        $region27: #{tpu_custom_call.1} parent=23 // pred_region
          %s158 = sand.u32 %s26, 1
          %s159 = scalar_lea.sflag [#allocation3], %s158
          %s160 = sand.u32 %s26, 1
          %s161 = smul.addr %s160, 8
          %s162 = scalar_lea.vmem [#allocation2], %s161
          %s163 = smul.u32 2, %s16
          %165 = vsyncadd %s159, 0
          %s166 = smul.addr %s163, 4
          %s167 = scalar_lea.hbm %s0, %s166
          %s168 = sshll.u32 %s167, 4
          %s169 = int_to_ptr.hbm [resolvable:$true] %s168
          %s170 = sshll.u32 %s162, 4
          %s171 = int_to_ptr.vmem [resolvable:$true] %s170
          %176 = dma.hbm_to_vmem [thread:$0]  %s169, 128, %s171, %s159, 64, 64, 4
        $region28: #{tpu_custom_call.1} parent=23 // pred_fallthru
          _
      $region24: #{tpu_custom_call.1} parent=5 // pred_fallthru
        _
      %p177 = scmp.le.s32.totalorder 1, %s16
      %p178 = scmp.lt.s32.totalorder %s16, 3
      %p179 = pnand %p177, %p178
      %p180 = pneg %p179
      // Predicated region
      $region29: #{tpu_custom_call.1} parent=5 // pred_check
        _
      $region30: #{tpu_custom_call.1} parent=5 // pred_check_branch
        %182 = sbr.rel (%p179) target = $region32
      $region31: #{tpu_custom_call.1} parent=5 // pred_region
        %s183 = ssub.s32 %s16, 1
        %s184 = sand.u32 %s29, 1
        %s185 = scalar_lea.sflag [#allocation3], %s184
        %s186 = sand.u32 %s29, 1
        %s187 = smul.addr %s186, 8
        %s188 = scalar_lea.vmem [#allocation2], %s187
        // Predicated region
        $region33: #{tpu_custom_call.1} parent=31 // pred_check
          %p189 = pneg %p42
        $region34: #{tpu_custom_call.1} parent=31 // pred_check_branch
          %191 = sbr.rel (%p189) target = $region36
        $region35: #{tpu_custom_call.1} parent=31 // pred_region
          %193 = dma.done %s185, 128
        $region36: #{tpu_custom_call.1} parent=31 // pred_fallthru
          _
        // Predicated region
        $region37: #{tpu_custom_call.1} parent=31 // pred_check
          %p194 = pneg %p63
        $region38: #{tpu_custom_call.1} parent=31 // pred_check_branch
          %196 = sbr.rel (%p194) target = $region40
        $region39: #{tpu_custom_call.1} parent=31 // pred_region
          %198 = dma.done [#allocation6], 1024
        $region40: #{tpu_custom_call.1} parent=31 // pred_fallthru
          _
        // Predicated region
        $region41: #{tpu_custom_call.1} parent=31 // pred_check
          %p199 = pneg %p84
        $region42: #{tpu_custom_call.1} parent=31 // pred_check_branch
          %201 = sbr.rel (%p199) target = $region44
        $region43: #{tpu_custom_call.1} parent=31 // pred_region
          %203 = dma.done [#allocation6], 64
        $region44: #{tpu_custom_call.1} parent=31 // pred_fallthru
          _
        %s204 = sand.u32 %s29, 1
        %s205 = scalar_lea.sflag [#allocation3], %s204
        %s206 = sand.u32 %s29, 1
        %s207 = smul.addr %s206, 8
        %s208 = scalar_lea.vmem [#allocation2], %s207
        %p209 = pneg %p42
        %p210 = pneg %p39
        %p211 = pneg %p63
        %p212 = pneg %p60
        %p213 = pneg %p84
        %p214 = pneg %p81
        %p215 = pneg %p110
        %p216 = pneg %p107
        %s217 = sand.u32 %s97, 1
        %s218 = scalar_lea.sflag [#allocation4], %s217
        %s219 = sand.u32 %s97, 1
        %s220 = smul.addr %s219, 16
        %s221 = scalar_lea.vmem [#allocation8], %s220
        %s222 = smul.u32 2, %s21
        %s223 = smul.u32 2, %s21
        %v224 = vld [vmem:[%s188] sm:$0xf]
        %v225 = vld [vmem:[%s188 + $0x4] sm:$0xf]
        %v226 = vld [vmem:[#allocation5] sm:$0xf]
        %v227 = vld [vmem:[#allocation5 + $0x4] sm:$0xf]
        %v228 = vld [vmem:[#allocation5 + $0x8] sm:$0xf]
        %v229 = vld [vmem:[#allocation5 + $0xc] sm:$0xf]
        %v230 = vld [vmem:[#allocation5 + $0x10] sm:$0xf]
        %v231 = vld [vmem:[#allocation5 + $0x14] sm:$0xf]
        %v232 = vld [vmem:[#allocation5 + $0x18] sm:$0xf]
        %v233 = vld [vmem:[#allocation5 + $0x1c] sm:$0xf]
        %v234 = vld [vmem:[#allocation5 + $0x20] sm:$0xf]
        %v235 = vld [vmem:[#allocation5 + $0x24] sm:$0xf]
        %v236 = vld [vmem:[#allocation5 + $0x28] sm:$0xf]
        %v237 = vld [vmem:[#allocation5 + $0x2c] sm:$0xf]
        %v238 = vld [vmem:[#allocation5 + $0x30] sm:$0xf]
        %v239 = vld [vmem:[#allocation5 + $0x34] sm:$0xf]
        %v240 = vld [vmem:[#allocation5 + $0x38] sm:$0xf]
        %v241 = vld [vmem:[#allocation5 + $0x3c] sm:$0xf]
        %v242 = vld [vmem:[#allocation7] sm:$0x1]
        %v243 = vperm.slane %v242, 0
        %v246 = vunpack.c.l.b16 %v224
        %v247 = vunpack.c.l.b16 %v225
        %v248 = vpack.c.b16 %v247, %v246
        %v266 = vunpack.c.l.b16 %v226
        %v267 = vunpack.c.l.b16 %v227
        %v268 = vunpack.c.l.b16 %v228
        %v269 = vunpack.c.l.b16 %v229
        %v270 = vunpack.c.l.b16 %v230
        %v271 = vunpack.c.l.b16 %v231
        %v272 = vunpack.c.l.b16 %v232
        %v273 = vunpack.c.l.b16 %v233
        %v274 = vunpack.c.l.b16 %v234
        %v275 = vunpack.c.l.b16 %v235
        %v276 = vunpack.c.l.b16 %v236
        %v277 = vunpack.c.l.b16 %v237
        %v278 = vunpack.c.l.b16 %v238
        %v279 = vunpack.c.l.b16 %v239
        %v280 = vunpack.c.l.b16 %v240
        %v281 = vunpack.c.l.b16 %v241
        %v282 = vpack.c.b16 %v267, %v266
        %v283 = vpack.c.b16 %v269, %v268
        %v284 = vpack.c.b16 %v271, %v270
        %v285 = vpack.c.b16 %v273, %v272
        %v286 = vpack.c.b16 %v275, %v274
        %v287 = vpack.c.b16 %v277, %v276
        %v288 = vpack.c.b16 %v279, %v278
        %v289 = vpack.c.b16 %v281, %v280
        %298 = vmatpush.bf16.msra.mxu0 %v289
        %299 = vmatpush.bf16.msra.mxu0 %v288
        %300 = vmatpush.bf16.msra.mxu0 %v287
        %301 = vmatpush.bf16.msra.mxu0 %v286
        %302 = vmatpush.bf16.msra.mxu0 %v285
        %303 = vmatpush.bf16.msra.mxu0 %v284
        %304 = vmatpush.bf16.msra.mxu0 %v283
        %305 = vmatpush.bf16.msra.mxu0 %v282
        %306 = vmatmul.bf16.gmra.mxu0 %v248
        %v307 = vpop.f32.mrf.mxu0
        %v308 = vadd.f32 %v243, %v307
        %v309 = vpop.f32.mrf.mxu0
        %v310 = vadd.f32 %v243, %v309
        %311 = vdwg.mxu0
        %312 = vadd.xlane.f32.xlu0 %v308
        %v313 = vpop.xlane.xlu0 %312
        %314 = vadd.xlane.f32.xlu0 %v310
        %v315 = vpop.xlane.xlu0 %314
        %v316 = vrcp.pop 128.0
        %v317 = vmul.f32 128.0, %v316
        %v318 = vsub.f32 1.0, %v317
        %v319 = vmul.f32 %v316, %v318
        %v320 = vadd.f32 %v316, %v319
        %vm321 = vweird.f32 %v316
        %v322 = vsel %vm321, %v316, %v320
        %v323 = vmul.f32 %v313, %v322
        %v324 = vmul.f32 %v315, %v322
        %v325 = vsub.f32 %v308, %v323
        %v326 = vsub.f32 %v310, %v324
        %v327 = vmul.f32 %v325, %v325
        %v328 = vmul.f32 %v326, %v326
        %329 = vadd.xlane.f32.xlu0 %v327
        %v330 = vpop.xlane.xlu0 %329
        %331 = vadd.xlane.f32.xlu0 %v328
        %v332 = vpop.xlane.xlu0 %331
        %v333 = vmul.f32 %v330, %v322
        %v334 = vmul.f32 %v332, %v322
        %v335 = vadd.f32 %v333, 1e-05
        %v336 = vadd.f32 %v334, 1e-05
        %v337 = vrsqrt.pop %v335
        %v338 = vmul.f32 %v337, %v335
        %v339 = vmul.f32 %v338, %v337
        %v340 = vmul.f32 0.5, %v339
        %v341 = vsub.f32 1.5, %v340
        %v342 = vmul.f32 %v337, %v341
        %vm343 = vweird.f32 %v335
        %vm344 = vweird.f32 %v337
        %vm345 = vmor %vm343, %vm344
        %v346 = vsel %vm345, %v337, %v342
        %v347 = vrsqrt.pop %v336
        %v348 = vmul.f32 %v347, %v336
        %v349 = vmul.f32 %v348, %v347
        %v350 = vmul.f32 0.5, %v349
        %v351 = vsub.f32 1.5, %v350
        %v352 = vmul.f32 %v347, %v351
        %vm353 = vweird.f32 %v336
        %vm354 = vweird.f32 %v347
        %vm355 = vmor %vm353, %vm354
        %v356 = vsel %vm355, %v347, %v352
        %v357 = vmul.f32 %v325, %v346
        %v358 = vmul.f32 %v326, %v356
        %v359 = vld [vmem:[#allocation7 + $0x1] sm:$0x1]
        %v360 = vperm.slane %v359, 0
        %v361 = vmul.f32 %v357, %v360
        %v362 = vmul.f32 %v358, %v360
        %v363 = vld [vmem:[#allocation7 + $0x2] sm:$0x1]
        %v364 = vperm.slane %v363, 0
        %v365 = vadd.f32 %v361, %v364
        %v366 = vadd.f32 %v362, %v364
        %v367 = vmul.f32 %v365, %v365
        %v368 = vmul.f32 %v366, %v366
        %369 = vadd.xlane.f32.xlu0 %v367
        %v370 = vpop.xlane.xlu0 %369
        %371 = vadd.xlane.f32.xlu0 %v368
        %v372 = vpop.xlane.xlu0 %371
        %v373 = vmax.f32 %v370, 1e-24
        %v374 = vmax.f32 %v372, 1e-24
        %v375 = vrsqrt.pop %v373
        %v376 = vmul.f32 %v375, %v373
        %v377 = vmul.f32 %v376, %v375
        %v378 = vmul.f32 0.5, %v377
        %v379 = vsub.f32 1.5, %v378
        %v380 = vmul.f32 %v375, %v379
        %vm381 = vweird.f32 %v373
        %vm382 = vweird.f32 %v375
        %vm383 = vmor %vm381, %vm382
        %v384 = vsel %vm383, %v375, %v380
        %v385 = vrsqrt.pop %v374
        %v386 = vmul.f32 %v385, %v374
        %v387 = vmul.f32 %v386, %v385
        %v388 = vmul.f32 0.5, %v387
        %v389 = vsub.f32 1.5, %v388
        %v390 = vmul.f32 %v385, %v389
        %vm391 = vweird.f32 %v374
        %vm392 = vweird.f32 %v385
        %vm393 = vmor %vm391, %vm392
        %v394 = vsel %vm393, %v385, %v390
        %v395 = vmul.f32 %v365, %v384
        %v396 = vmul.f32 %v366, %v394
        %397 = vst [vmem:[%s221] sm:$0xff] %v395
        %398 = vst [vmem:[%s221 + $0x8] sm:$0xff] %v396
        %s399 = sand.u32 %s97, 1
        %s400 = scalar_lea.sflag [#allocation4], %s399
        %s401 = sand.u32 %s97, 1
        %s402 = smul.addr %s401, 16
        %s403 = scalar_lea.vmem [#allocation8], %s402
        // Predicated region
        $region45: #{tpu_custom_call.1} parent=31 // pred_check
          %p404 = pneg %p107
        $region46: #{tpu_custom_call.1} parent=31 // pred_check_branch
          %406 = sbr.rel (%p404) target = $region48
        $region47: #{tpu_custom_call.1} parent=31 // pred_region
          %s407 = smul.u32 2, %s21
          %409 = vsyncadd %s400, 0
          %s410 = smul.addr %s407, 8
          %s411 = scalar_lea.hbm %s3, %s410
          %s412 = sshll.u32 %s403, 4
          %s413 = int_to_ptr.vmem [resolvable:$true] %s412
          %s414 = sshll.u32 %s411, 4
          %s415 = int_to_ptr.hbm [resolvable:$true] %s414
          %420 = dma.vmem_to_hbm [thread:$0]  %s413, 256, %s415, %s400, 128, 128, 8
        $region48: #{tpu_custom_call.1} parent=31 // pred_fallthru
          _
      $region32: #{tpu_custom_call.1} parent=5 // pred_fallthru
        _
      %p421 = scmp.le.s32.totalorder 2, %s16
      // Predicated region
      $region49: #{tpu_custom_call.1} parent=5 // pred_check
        %p422 = pneg %p421
      $region50: #{tpu_custom_call.1} parent=5 // pred_check_branch
        %424 = sbr.rel (%p422) target = $region52
      $region51: #{tpu_custom_call.1} parent=5 // pred_region
        %s425 = ssub.s32 %s16, 2
        // Predicated region
        $region53: #{tpu_custom_call.1} parent=51 // pred_check
          %p426 = pneg %p113
        $region54: #{tpu_custom_call.1} parent=51 // pred_check_branch
          %428 = sbr.rel (%p426) target = $region56
        $region55: #{tpu_custom_call.1} parent=51 // pred_region
          %s429 = sand.u32 %s98, 1
          %s430 = scalar_lea.sflag [#allocation4], %s429
          %s431 = sand.u32 %s98, 1
          %s432 = smul.addr %s431, 16
          %s433 = scalar_lea.vmem [#allocation8], %s432
          %435 = dma.done %s430, 256
        $region56: #{tpu_custom_call.1} parent=51 // pred_fallthru
          _
      $region52: #{tpu_custom_call.1} parent=5 // pred_fallthru
        _
    $region6: #{tpu_custom_call.1} parent=1 // loop_footer
      %s20 = sadd.s32 1, %s16
    $region7: #{tpu_custom_call.1} parent=1 // loop_footer_branch
      %15 = sbr.rel target = $region3
    $region8: #{tpu_custom_call.1} parent=1 // loop_exit
      _
    %436 = vsyncpa [#allocation3], 1
    %s437 = scalar_lea.sflag [#allocation3], 1
    %438 = vsyncpa %s437, 1
    %439 = vsyncpa [#allocation6], 1
    %440 = vsyncpa [#allocation4], 1
    %s441 = scalar_lea.sflag [#allocation4], 1
    %442 = vsyncpa %s441, 1

</llo_original>
